<compile_context>
chip_gen: v6e
topology: v6e:2x2x1
jax: 0.10.0
libtpu: 0.0.40
codegen_flags: <defaults>
</compile_context>

<pallas_src>
import jax
import jax.numpy as jnp
from jax import lax
from jax.experimental import pallas as pl
from jax.experimental.pallas import tpu as pltpu


def _round_up(x, m):
    return ((x + m - 1) // m) * m


def _conv1d_kernel(xcol_ref, w_ref, b_ref, o_ref):
    # xcol_ref: (1, CK_pad, TL)          activation tile (im2col, batch folded)
    # w_ref   : (1, Cout_g_pad, CK_pad)  this group's flattened weights (resident)
    # b_ref   : (1, Cout_g_pad, 1)       this group's bias (f32)
    # o_ref   : (1, Cout_g_pad, TL)
    x = xcol_ref[0]
    w = w_ref[0]
    b = b_ref[0]
    acc = jnp.dot(w, x, preferred_element_type=jnp.float32)   # MXU matmul
    o_ref[0] = (acc + b).astype(o_ref.dtype)


def my_conv1d_pad_same(x, weight, bias, *, stride, groups, compute_dtype=None,
                       tl_target=1024):
    """Grouped Conv1d with SAME padding (PyTorch MyConv1dPadSame forward).

    x: (N, C_in, L); weight: (C_out, C_in//groups, K); bias: (C_out,).
    compute_dtype: optional dtype for the MXU operands (e.g. jnp.bfloat16);
                   accumulation stays f32 and the output keeps x.dtype.
    """
    N, C_in, L = x.shape
    C_out, Cin_g, K = weight.shape
    assert C_in % groups == 0 and C_out % groups == 0
    assert Cin_g == C_in // groups
    Cout_g = C_out // groups
    out_dtype = x.dtype
    cdtype = jnp.dtype(compute_dtype) if compute_dtype is not None else jnp.dtype(x.dtype)

    # ---- SAME padding (exactly as in the PyTorch module) ----
    L_out = (L + stride - 1) // stride
    p = max(0, (L_out - 1) * stride + K - L)
    pad_left = p // 2
    pad_right = p - pad_left

    # Cast BEFORE the K-way im2col expansion so the expanded activation slab
    # (and the pallas_call's reads of it) are already in the compute dtype.
    x_c = x.astype(cdtype)
    x_pad = jnp.pad(x_c, ((0, 0), (0, 0), (pad_left, pad_right)))

    # ---- im2col glue (pure JAX): (N, C_in, K, L_out) ----
    # TODO(synk): for stride << K convs, fuse this window extraction into the
    # kernel (manual DMA of overlapping per-tile input windows) to avoid the
    # K/stride-x expansion of activation HBM traffic.
    cols = jnp.stack(
        [lax.slice_in_dim(x_pad, k, k + (L_out - 1) * stride + 1, stride, axis=2)
         for k in range(K)],
        axis=2,
    )
    CK = Cin_g * K
    # group + flatten (cin_g major, k minor) to match weight flattening, and
    # fold batch into the output-position (lane) axis: (groups, CK, N*L_out)
    x_col = cols.reshape(N, groups, Cin_g, K, L_out).reshape(N, groups, CK, L_out)
    x_col = jnp.transpose(x_col, (1, 2, 0, 3)).reshape(groups, CK, N * L_out)

    w_flat = weight.reshape(groups, Cout_g, Cin_g, K).reshape(groups, Cout_g, CK)
    b_g = bias.reshape(groups, Cout_g).astype(jnp.float32)

    # ---- alignment padding: sublane multiple for CK/Cout_g, 128-lane tiles for M
    sub = 8 if cdtype.itemsize == 4 else 16
    CK_pad = _round_up(CK, sub)
    Cout_g_pad = _round_up(Cout_g, sub)
    M = N * L_out

    TL = min(_round_up(max(tl_target, 128), 128), _round_up(M, 128))
    cbytes = cdtype.itemsize
    obytes = jnp.dtype(out_dtype).itemsize
    vmem_limit = 32 * 1024 * 1024          # safe request on v5e/v6e/v7x
    vmem_budget = 24 * 1024 * 1024         # working-set cap with headroom

    def _footprint(tl):
        return (2 * CK_pad * tl * cbytes             # x tiles (double-buffered)
                + 2 * Cout_g_pad * tl * obytes       # out tiles (double-buffered)
                + 2 * Cout_g_pad * CK_pad * cbytes   # weight tile buffers
                + 2 * Cout_g_pad * 4)                # bias tile buffers

    while TL > 128 and _footprint(TL) > vmem_budget:
        TL //= 2
    M_pad = _round_up(M, TL)
    n_tiles = M_pad // TL

    x_col = jnp.pad(x_col, ((0, 0), (0, CK_pad - CK), (0, M_pad - M)))
    w_flat = jnp.pad(w_flat, ((0, 0), (0, Cout_g_pad - Cout_g),
                              (0, CK_pad - CK))).astype(cdtype)
    b_g = jnp.pad(b_g, ((0, 0), (0, Cout_g_pad - Cout_g))).reshape(groups, Cout_g_pad, 1)

    cost = pl.CostEstimate(
        flops=2 * groups * Cout_g_pad * CK_pad * M_pad,
        transcendentals=0,
        bytes_accessed=(x_col.size * cbytes + w_flat.size * cbytes
                        + b_g.size * 4 + groups * Cout_g_pad * M_pad * obytes),
    )

    out = pl.pallas_call(
        _conv1d_kernel,
        out_shape=jax.ShapeDtypeStruct((groups, Cout_g_pad, M_pad), out_dtype),
        grid_spec=pltpu.PrefetchScalarGridSpec(
            num_scalar_prefetch=0,
            # groups outermost -> weight/bias tiles keep the same block index
            # across all inner length-tile iterations and stay VMEM-resident.
            grid=(groups, n_tiles),
            in_specs=[
                pl.BlockSpec((1, CK_pad, TL), lambda g, t: (g, 0, t)),
                pl.BlockSpec((1, Cout_g_pad, CK_pad), lambda g, t: (g, 0, 0)),
                pl.BlockSpec((1, Cout_g_pad, 1), lambda g, t: (g, 0, 0)),
            ],
            out_specs=pl.BlockSpec((1, Cout_g_pad, TL), lambda g, t: (g, 0, t)),
        ),
        compiler_params=pltpu.CompilerParams(
            dimension_semantics=("parallel", "parallel"),
            vmem_limit_bytes=vmem_limit),
        cost_estimate=cost,
    )(x_col, w_flat, b_g)

    # drop alignment padding, unfold batch, back to (N, C_out, L_out)
    out = out[:, :Cout_g, :M].reshape(groups, Cout_g, N, L_out)
    out = jnp.transpose(out, (2, 0, 1, 3)).reshape(N, C_out, L_out)
    return out


def _reference(x, weight, bias, *, stride, groups):
    """Pure-JAX reference replicating the PyTorch forward."""
    N, C_in, L = x.shape
    K = weight.shape[-1]
    L_out = (L + stride - 1) // stride
    p = max(0, (L_out - 1) * stride + K - L)
    pad_left = p // 2
    pad_right = p - pad_left
    y = lax.conv_general_dilated(
        x, weight,
        window_strides=(stride,),
        padding=[(pad_left, pad_right)],
        dimension_numbers=("NCH", "OIH", "NCH"),
        feature_group_count=groups,
    )
    return y + bias[None, :, None]


def _make_case(key, *, N, C_in, C_out, K, groups, L):
    kx, kw, kb = jax.random.split(key, 3)
    x = jax.random.normal(kx, (N, C_in, L), dtype=jnp.float32)
    # PyTorch Conv1d default init: U(-1/sqrt(fan_in), 1/sqrt(fan_in))
    fan_in = (C_in // groups) * K
    bound = 1.0 / (fan_in ** 0.5)
    w = jax.random.uniform(kw, (C_out, C_in // groups, K),
                           minval=-bound, maxval=bound, dtype=jnp.float32)
    b = jax.random.uniform(kb, (C_out,), minval=-bound, maxval=bound,
                           dtype=jnp.float32)
    return x, w, b


if __name__ == "__main__":
    key = jax.random.PRNGKey(0)
    k1, k2 = jax.random.split(key)

    # Module config from the spec (small shapes), strided SAME conv.
    x, w, b = _make_case(k1, N=2, C_in=4, C_out=8, K=3, groups=1, L=16)
    y = jax.block_until_ready(my_conv1d_pad_same(x, w, b, stride=2, groups=1))
    y_ref = _reference(x, w, b, stride=2, groups=1)
    assert y.shape == y_ref.shape, (y.shape, y_ref.shape)
    assert jnp.allclose(y, y_ref, atol=1e-5, rtol=1e-5), \
        float(jnp.max(jnp.abs(y - y_ref)))

    # Grouped config (exercises the weight-resident group grid axis).
    x2, w2, b2 = _make_case(k2, N=2, C_in=4, C_out=8, K=3, groups=2, L=16)
    y2 = jax.block_until_ready(my_conv1d_pad_same(x2, w2, b2, stride=1, groups=2))
    y2_ref = _reference(x2, w2, b2, stride=1, groups=2)
    assert y2.shape == y2_ref.shape, (y2.shape, y2_ref.shape)
    assert jnp.allclose(y2, y2_ref, atol=1e-5, rtol=1e-5), \
        float(jnp.max(jnp.abs(y2 - y2_ref)))

    # bf16 MXU operand path (v5e/v6e/v7x): f32 accumulation, loose tolerance.
    y_bf = jax.block_until_ready(
        my_conv1d_pad_same(x, w, b, stride=2, groups=1,
                           compute_dtype=jnp.bfloat16))
    assert jnp.allclose(y_bf, y_ref, atol=1e-1, rtol=1e-1), \
        float(jnp.max(jnp.abs(y_bf - y_ref)))

    print("KERNEL_OK")
</pallas_src>

<mosaic_0001>
module attributes {stable_mosaic.version = 11 : i64} {
  func.func @_conv1d_kernel(%arg0: i32, %arg1: i32, %arg2: memref<1x16x128xf32, #tpu.memory_space<vmem>>, %arg3: memref<1x8x16xf32, #tpu.memory_space<vmem>>, %arg4: memref<1x8x1xf32, #tpu.memory_space<vmem>>, %arg5: memref<1x8x128xf32, #tpu.memory_space<vmem>>) attributes {dimension_semantics = [#tpu.dimension_semantics<parallel>, #tpu.dimension_semantics<parallel>], iteration_bounds = array<i64: 1, 1>, scalar_prefetch = 0 : i64, scratch_operands = 0 : i64, tpu.core_type = #tpu.core_type<tc>, window_params = [{transform_indices = @transform_0, window_bounds = array<i64: 1, 16, 128>}, {transform_indices = @transform_1, window_bounds = array<i64: 1, 8, 16>}, {transform_indices = @transform_2, window_bounds = array<i64: 1, 8, 1>}, {transform_indices = @transform_3, window_bounds = array<i64: 1, 8, 128>}]} {
    %c0 = arith.constant 0 : index
    %c0_0 = arith.constant 0 : index
    %c0_1 = arith.constant 0 : index
    %0 = vector.load %arg2[%c0, %c0_0, %c0_1] : memref<1x16x128xf32, #tpu.memory_space<vmem>>, vector<1x16x128xf32>
    %1 = vector.shape_cast %0 : vector<1x16x128xf32> to vector<16x128xf32>
    %c0_2 = arith.constant 0 : index
    %c0_3 = arith.constant 0 : index
    %c0_4 = arith.constant 0 : index
    %2 = vector.load %arg3[%c0_2, %c0_3, %c0_4] : memref<1x8x16xf32, #tpu.memory_space<vmem>>, vector<1x8x16xf32>
    %3 = vector.shape_cast %2 : vector<1x8x16xf32> to vector<8x16xf32>
    %c0_5 = arith.constant 0 : index
    %c0_6 = arith.constant 0 : index
    %c0_7 = arith.constant 0 : index
    %4 = vector.load %arg4[%c0_5, %c0_6, %c0_7] : memref<1x8x1xf32, #tpu.memory_space<vmem>>, vector<1x8x1xf32>
    %5 = vector.shape_cast %4 : vector<1x8x1xf32> to vector<8x1xf32>
    %cst = arith.constant dense<0.000000e+00> : vector<8x128xf32>
    %6 = tpu.matmul %3, %1, %cst {dimension_numbers = #tpu.dot_dimension_numbers<[1], [0], [0], [1], [0, 0, 1, 1], [], []>} : vector<8x16xf32>, vector<16x128xf32>, vector<8x128xf32> -> vector<8x128xf32>
    %7 = vector.broadcast %5 : vector<8x1xf32> to vector<8x128xf32>
    %8 = arith.addf %6, %7 : vector<8x128xf32>
    %c0_8 = arith.constant 0 : index
    %c0_9 = arith.constant 0 : index
    %c0_10 = arith.constant 0 : index
    %9 = vector.load %arg5[%c0_8, %c0_9, %c0_10] : memref<1x8x128xf32, #tpu.memory_space<vmem>>, vector<1x8x128xf32>
    %10 = vector.shape_cast %9 : vector<1x8x128xf32> to vector<8x128xf32>
    %11 = vector.shape_cast %8 : vector<8x128xf32> to vector<1x8x128xf32>
    tpu.vector_store %arg5[%c0_8, %c0_9, %c0_10], %11 {strides = array<i32>} : memref<1x8x128xf32, #tpu.memory_space<vmem>>, vector<1x8x128xf32>,
    return
  }
  func.func @transform_0(%arg0: i32, %arg1: i32) -> (i32, i32, i32) {
    %c0_i32 = arith.constant 0 : i32
    %c0_i32_0 = arith.constant 0 : i32
    return %arg0, %c0_i32, %arg1 : i32, i32, i32
  }
  func.func @transform_1(%arg0: i32, %arg1: i32) -> (i32, i32, i32) {
    %c0_i32 = arith.constant 0 : i32
    %c0_i32_0 = arith.constant 0 : i32
    %c0_i32_1 = arith.constant 0 : i32
    return %arg0, %c0_i32, %c0_i32_0 : i32, i32, i32
  }
  func.func @transform_2(%arg0: i32, %arg1: i32) -> (i32, i32, i32) {
    %c0_i32 = arith.constant 0 : i32
    %c0_i32_0 = arith.constant 0 : i32
    %c0_i32_1 = arith.constant 0 : i32
    return %arg0, %c0_i32, %c0_i32_0 : i32, i32, i32
  }
  func.func @transform_3(%arg0: i32, %arg1: i32) -> (i32, i32, i32) {
    %c0_i32 = arith.constant 0 : i32
    %c0_i32_0 = arith.constant 0 : i32
    return %arg0, %c0_i32, %arg1 : i32, i32, i32
  }
}

</mosaic_0001>

<llo_original>
// kernel: tpu_custom_call.1
$region0: #{tpu_custom_call.1}
  #allocation0 [shape = 'u32[]', space=smem, size = 0x4, offset = 0x4, fixed_abs, tag = 'smem constant byte address 0x4 - core index']
  #allocation1 [shape = 'u32[144,128]{1,0:T(1,128)}', space=vmem, size = 0x12000, scoped, tag = 'internal scratch']
  %s0 = inlined_call_operand.hbm [shape: f32[1,16,128], index: 0, kind: input, shape index: {}]
  %s1 = inlined_call_operand.vmem [shape: f32[1,8,16], index: 1, kind: input, shape index: {}]
  %s2 = inlined_call_operand.vmem [shape: f32[1,8,1], index: 2, kind: input, shape index: {}]
  %s3 = inlined_call_operand.hbm [shape: f32[1,8,128], index: 3, kind: output, shape index: {}]
  %s4 = sld [smem:[#allocation0]]
  $region26: #{tpu_custom_call.1} parent=0
    _
  %s6 = ssub.s32 1, %s4
  %s7 = scalar_select 0, %s6, %s4
  $region1: #{tpu_custom_call.1} parent=0
    #allocation2 [shape = 'u8[8192]{0}', space=vmem, size = 0x2000, scoped, tag = 'input window, operand 0, single buffered']
    #allocation3 [shape = 's32[1]{0}', space=sflag, size = 0x4, scoped, tag = 'scoped memory for tpu_custom_call.1']
    #allocation4 [shape = 's32[1]{0}', space=sflag, size = 0x4, scoped, tag = 'scoped memory for tpu_custom_call.1']
    #allocation5 [shape = 'u8[4096]{0}', space=vmem, size = 0x1000, scoped, tag = 'output window, operand 0, single buffered']
    %8 = vsyncpa [#allocation3], 0
    %9 = vsyncpa [#allocation4], 0
    // Predicated region
    $region2: #{tpu_custom_call.1} parent=1 // pred_check
      _
    $region3: #{tpu_custom_call.1} parent=1 // pred_check_branch
      %11 = sbr.rel (0) target = $region5
    $region4: #{tpu_custom_call.1} parent=1 // pred_region
      %s13 = ssub.s32 256, 256
      %14 = vsyncadd [#allocation3], %s13
      %s15 = sshll.u32 [#allocation2], 4
      %s16 = int_to_ptr.vmem [resolvable:$true] %s15
      %21 = dma.hbm_to_vmem [thread:$0]  %s0, 256, %s16, [#allocation3], 128, 128, 8
    $region5: #{tpu_custom_call.1} parent=1 // pred_fallthru
      _
    // Predicated region
    $region6: #{tpu_custom_call.1} parent=1 // pred_check
      _
    $region7: #{tpu_custom_call.1} parent=1 // pred_check_branch
      %23 = sbr.rel (0) target = $region9
    $region8: #{tpu_custom_call.1} parent=1 // pred_region
      _
    $region9: #{tpu_custom_call.1} parent=1 // pred_fallthru
      _
    // Predicated region
    $region10: #{tpu_custom_call.1} parent=1 // pred_check
      _
    $region11: #{tpu_custom_call.1} parent=1 // pred_check_branch
      %25 = sbr.rel (0) target = $region13
    $region12: #{tpu_custom_call.1} parent=1 // pred_region
      _
    $region13: #{tpu_custom_call.1} parent=1 // pred_fallthru
      _
    // Predicated region
    $region14: #{tpu_custom_call.1} parent=1 // pred_check
      _
    $region15: #{tpu_custom_call.1} parent=1 // pred_check_branch
      %27 = sbr.rel (0) target = $region17
    $region16: #{tpu_custom_call.1} parent=1 // pred_region
      %28 = dma.done [#allocation3], 256
    $region17: #{tpu_custom_call.1} parent=1 // pred_fallthru
      _
    %v29 = vld [vmem:[#allocation2] sm:$0xff]
    %v30 = vld [vmem:[#allocation2 + $0x8] sm:$0xff]
    %v31 = vld [vmem:[%s1] sm:$0xff]
    %v32 = vld [vmem:[%s2] sm:$0xff]
    %34 = vset.pattern.permute.xlu0 0
    %35 = vperm.xlu0 %34, %v32
    %v36 = vpop.permute.xlu0 %35
    %vm38 = vcmask 130048
    %v40 = vsel %vm38, %v31, 0
    %42 = vmatprep.subr.mxu0 0.0
    %43 = vmatpush1.msra.mxu0 0.0
    %44 = vmatprep.subr.mxu0 0.0
    %45 = vmatpush1.msra.mxu0 0.0
    %46 = vmatprep.subr.mxu0 0.0
    %47 = vmatpush1.msra.mxu0 0.0
    %48 = vmatprep.subr.mxu0 0.0
    %49 = vmatpush1.msra.mxu0 0.0
    %50 = vmatprep.subr.mxu0 0.0
    %51 = vmatpush1.msra.mxu0 0.0
    %52 = vmatprep.subr.mxu0 0.0
    %53 = vmatpush1.msra.mxu0 0.0
    %54 = vmatprep.subr.mxu0 0.0
    %55 = vmatpush1.msra.mxu0 0.0
    %56 = vmatprep.subr.mxu0 0.0
    %57 = vmatpush1.msra.mxu0 0.0
    %58 = vmatprep.subr.mxu0 0.0
    %59 = vmatpush1.msra.mxu0 0.0
    %60 = vmatprep.subr.mxu0 0.0
    %61 = vmatpush1.msra.mxu0 0.0
    %62 = vmatprep.subr.mxu0 0.0
    %63 = vmatpush1.msra.mxu0 0.0
    %64 = vmatprep.subr.mxu0 0.0
    %65 = vmatpush1.msra.mxu0 0.0
    %66 = vmatprep.subr.mxu0 0.0
    %67 = vmatpush1.msra.mxu0 0.0
    %68 = vmatprep.subr.mxu0 0.0
    %69 = vmatpush1.msra.mxu0 0.0
    %70 = vmatprep.subr.mxu0 0.0
    %71 = vmatpush1.msra.mxu0 %v30
    %72 = vmatprep.subr.mxu0 0.0
    %73 = vmatpush1.msra.mxu0 %v29
    %74 = vmatprep.subr.mxu0 0.0
    %75 = vmatpush2.msra.mxu0 0.0
    %76 = vmatprep.subr.mxu0 0.0
    %77 = vmatpush2.msra.mxu0 0.0
    %78 = vmatprep.subr.mxu0 0.0
    %79 = vmatpush2.msra.mxu0 0.0
    %80 = vmatprep.subr.mxu0 0.0
    %81 = vmatpush2.msra.mxu0 0.0
    %82 = vmatprep.subr.mxu0 0.0
    %83 = vmatpush2.msra.mxu0 0.0
    %84 = vmatprep.subr.mxu0 0.0
    %85 = vmatpush2.msra.mxu0 0.0
    %86 = vmatprep.subr.mxu0 0.0
    %87 = vmatpush2.msra.mxu0 0.0
    %88 = vmatprep.subr.mxu0 0.0
    %89 = vmatpush2.msra.mxu0 0.0
    %90 = vmatprep.subr.mxu0 0.0
    %91 = vmatpush2.msra.mxu0 0.0
    %92 = vmatprep.subr.mxu0 0.0
    %93 = vmatpush2.msra.mxu0 0.0
    %94 = vmatprep.subr.mxu0 0.0
    %95 = vmatpush2.msra.mxu0 0.0
    %96 = vmatprep.subr.mxu0 0.0
    %97 = vmatpush2.msra.mxu0 0.0
    %98 = vmatprep.subr.mxu0 0.0
    %99 = vmatpush2.msra.mxu0 0.0
    %100 = vmatprep.subr.mxu0 0.0
    %101 = vmatpush2.msra.mxu0 0.0
    %102 = vmatprep.subr.mxu0 0.0
    %103 = vmatpush2.msra.mxu0 0.0
    %104 = vmatprep.subr.mxu0 0.0
    %105 = vmatpush2.msra.mxu0 0.0
    %106 = vmatprep.mubr.f32.mxu0 0.0
    %107 = vmatmul.mubr.f32.gmra.mxu0 %v40
    %v108 = vpop.f32.mrf.mxu0
    %v109 = vadd.f32 %v36, %v108
    %v110 = vpop.f32.mrf.mxu0
    %111 = vdwg.mxu0
    %112 = vst [vmem:[#allocation5] sm:$0xff] %v109
    // Predicated region
    $region18: #{tpu_custom_call.1} parent=1 // pred_check
      _
    $region19: #{tpu_custom_call.1} parent=1 // pred_check_branch
      %114 = sbr.rel (0) target = $region21
    $region20: #{tpu_custom_call.1} parent=1 // pred_region
      %s116 = ssub.s32 128, 128
      %117 = vsyncadd [#allocation4], %s116
      %s119 = sshll.u32 [#allocation5], 4
      %s120 = int_to_ptr.vmem [resolvable:$true] %s119
      %122 = dma.vmem_to_hbm [thread:$0]  %s120, 128, %s3, [#allocation4]
    $region21: #{tpu_custom_call.1} parent=1 // pred_fallthru
      _
    // Predicated region
    $region22: #{tpu_custom_call.1} parent=1 // pred_check
      _
    $region23: #{tpu_custom_call.1} parent=1 // pred_check_branch
      %124 = sbr.rel (0) target = $region25
    $region24: #{tpu_custom_call.1} parent=1 // pred_region
      %125 = dma.done [#allocation4], 128
    $region25: #{tpu_custom_call.1} parent=1 // pred_fallthru
      _
    %126 = vsyncpa [#allocation3], 1
    %127 = vsyncpa [#allocation4], 1

</llo_original>
